<compile_context>
chip_gen: v7x
topology: tpu7x:2x2x1
jax: 0.10.0
libtpu: 0.0.40
codegen_flags: <defaults>
</compile_context>

<pallas_src>
import functools
import math

import jax
import jax.numpy as jnp
from jax.experimental import pallas as pl
from jax.experimental.pallas import tpu as pltpu


def _elu(x):
    # F.elu(alpha=1.0). exp(min(x,0)) - 1 is exact at 0 and lowers cleanly on
    # Mosaic (EUP exp); difference vs expm1 is ~1e-8, far below tolerance.
    return jnp.where(x > 0, x, jnp.exp(jnp.minimum(x, 0.0)) - 1.0)


def _round_up(v, m):
    return (v + m - 1) // m * m


def _gsa_kernel(q_ref, k_ref, xv_ref, out_ref, acc_scr, ss_scr):
    """One (row-tile i, key-tile j) grid step.

    q_ref  : (tq, Hp) f32   ELU(x @ Q) rows            (block depends on i only)
    k_ref  : (tk, Hp) f32   ELU(x @ K) rows            (block depends on j only)
    xv_ref : (tk, Fp) f32   value rows of x            (block depends on j only)
    out_ref: (tq, Fp) f32   output rows                (written at last key tile)
    acc_scr: (tq, Fp) f32   accumulator of (unnormalized) attn @ x
    ss_scr : (tq, 128) f32  lane-dense partial sums of squared scores
    """
    j = pl.program_id(1)

    @pl.when(j == 0)
    def _init():
        acc_scr[...] = jnp.zeros_like(acc_scr)
        ss_scr[...] = jnp.zeros_like(ss_scr)

    # Scores: contract the hidden dim of both operands -> no materialized k.T.
    s = jax.lax.dot_general(
        q_ref[...], k_ref[...],
        dimension_numbers=(((1,), (1,)), ((), ())),
        preferred_element_type=jnp.float32)              # (tq, tk) f32

    # Lane-dense partial sum of s^2: 128-wide chunks added on the VPU; the
    # cross-lane (XLU) reduction is deferred to the finalize block.
    ssp = ss_scr[...]
    tk = s.shape[1]
    for g in range(tk // 128):
        blk = s[:, g * 128:(g + 1) * 128]
        ssp = ssp + blk * blk
    ss_scr[...] = ssp

    acc_scr[...] += jnp.dot(s, xv_ref[...], preferred_element_type=jnp.float32)

    @pl.when(j == pl.num_programs(1) - 1)
    def _finalize():
        # F.normalize(attn, p=2, dim=-1, eps=1e-12): divide by max(||row||, eps).
        # The row scale factors out of attn @ x; eps is squared inside rsqrt.
        ss = jnp.sum(ss_scr[...], axis=-1, keepdims=True)          # (tq, 1)
        inv = jax.lax.rsqrt(jnp.maximum(ss, 1e-24))                # EUP rsqrt
        out_ref[...] = _elu(acc_scr[...] * inv).astype(out_ref.dtype)


@functools.partial(jax.jit, static_argnames=("tq", "tk"))
def global_self_attention(x, q_w, k_w, *, tq=512, tk=1024):
    n, f = x.shape
    f_w, h = q_w.shape
    assert f_w == f and k_w.shape == (f, h)

    # Lane-dense zero padding (exact: ELU(0) = 0, zero key rows contribute 0).
    f_pad = _round_up(f, 128)
    h_pad = _round_up(h, 128)

    n128 = _round_up(n, 128)
    tq = min(tq, n128)
    tk = min(tk, n128)
    tk = max(tq, (tk // tq) * tq)      # nested tiles: tq divides tk
    n_pad = _round_up(n128, tk)        # pad only to the larger tile (no LCM blowup)
    if n_pad // tq < 2 and n_pad >= 256:
        tq = n_pad // 2                # keep >=2 row tiles for megacore sharding

    hp = jax.lax.Precision.HIGHEST

    x_p = jnp.zeros((n_pad, f_pad), jnp.float32).at[:n, :f].set(
        x.astype(jnp.float32))
    # Fused [Q | K] weight (256-wide projection output fills the wide MXU).
    w_p = jnp.zeros((f_pad, 2 * h_pad), jnp.float32)
    w_p = w_p.at[:f, :h].set(q_w.astype(jnp.float32))
    w_p = w_p.at[:f, h_pad:h_pad + h].set(k_w.astype(jnp.float32))

    # Projections hoisted out of the kernel: O(N*F*H), tiny vs the O(N^2) core.
    qk = _elu(jnp.dot(x_p, w_p, precision=hp))
    q_p = qk[:, :h_pad]
    k_p = qk[:, h_pad:]

    grid = (n_pad // tq, n_pad // tk)

    cost = pl.CostEstimate(
        flops=2 * n_pad * n_pad * (h_pad + f_pad),
        transcendentals=n_pad * f_pad + n_pad,
        bytes_accessed=4 * (n_pad * h_pad
                            + grid[0] * n_pad * (h_pad + f_pad)
                            + n_pad * f_pad),
    )

    out = pl.pallas_call(
        _gsa_kernel,
        out_shape=jax.ShapeDtypeStruct((n_pad, f_pad), jnp.float32),
        grid_spec=pltpu.PrefetchScalarGridSpec(
            num_scalar_prefetch=0,
            grid=grid,
            in_specs=[
                pl.BlockSpec((tq, h_pad), lambda i, j: (i, 0)),    # q rows
                pl.BlockSpec((tk, h_pad), lambda i, j: (j, 0)),    # k rows
                pl.BlockSpec((tk, f_pad), lambda i, j: (j, 0)),    # value rows (x)
            ],
            out_specs=pl.BlockSpec((tq, f_pad), lambda i, j: (i, 0)),
            scratch_shapes=[
                pltpu.VMEM((tq, f_pad), jnp.float32),   # attn@x accumulator
                pltpu.VMEM((tq, 128), jnp.float32),     # lane-dense sum of squares
            ],
        ),
        compiler_params=pltpu.CompilerParams(
            dimension_semantics=("parallel", "arbitrary"),
        ),
        cost_estimate=cost,
    )(q_p, k_p, x_p)

    return out[:n, :f].astype(x.dtype)


def init_params(key, feat_dim, hidden_dim, gain=1.141):
    # xavier_normal_: std = gain * sqrt(2 / (fan_in + fan_out))
    std = gain * math.sqrt(2.0 / (feat_dim + hidden_dim))
    k1, k2 = jax.random.split(key)
    Q = std * jax.random.normal(k1, (feat_dim, hidden_dim), dtype=jnp.float32)
    K = std * jax.random.normal(k2, (feat_dim, hidden_dim), dtype=jnp.float32)
    return Q, K


def reference(x, Q, K):
    # f32 reference mirroring the PyTorch forward (HIGHEST so TPU XLA matmuls
    # don't silently drop to bf16).
    hp = jax.lax.Precision.HIGHEST
    q = _elu(jnp.dot(x, Q, precision=hp))
    k = _elu(jnp.dot(x, K, precision=hp))
    attn = jnp.dot(q, k.T, precision=hp)
    norm = jnp.sqrt(jnp.sum(attn * attn, axis=-1, keepdims=True))
    attn = attn / jnp.maximum(norm, 1e-12)
    return _elu(jnp.dot(attn, x, precision=hp))


if __name__ == "__main__":
    N, FEAT, HIDDEN = 64, 32, 16
    key = jax.random.PRNGKey(0)
    kx, kp = jax.random.split(key)
    x = jax.random.normal(kx, (N, FEAT), dtype=jnp.float32)
    Q, K = init_params(kp, FEAT, HIDDEN)

    out = jax.block_until_ready(global_self_attention(x, Q, K))
    ref = reference(x, Q, K)
    assert out.shape == (N, FEAT)
    err = float(jnp.max(jnp.abs(out - ref)))
    assert jnp.allclose(out, ref, atol=1e-2, rtol=1e-2), f"max err={err}"

    # Multi-row-tile check at default tiles (grid = (2, 1)).
    N2 = 1024
    x2 = jax.random.normal(jax.random.PRNGKey(1), (N2, FEAT), dtype=jnp.float32)
    out2 = jax.block_until_ready(global_self_attention(x2, Q, K))
    ref2 = reference(x2, Q, K)
    err2 = float(jnp.max(jnp.abs(out2 - ref2)))
    assert jnp.allclose(out2, ref2, atol=1e-2, rtol=1e-2), f"max err={err2}"

    # Multi-key-tile check (grid = (4, 4)): exercises the j-accumulation path.
    out3 = jax.block_until_ready(global_self_attention(x2, Q, K, tq=256, tk=256))
    err3 = float(jnp.max(jnp.abs(out3 - ref2)))
    assert jnp.allclose(out3, ref2, atol=1e-2, rtol=1e-2), f"max err={err3}"

    print("KERNEL_OK")
</pallas_src>

<mosaic_0001>
module attributes {stable_mosaic.version = 11 : i64} {
  func.func @_gsa_kernel(%arg0: i32, %arg1: i32, %arg2: memref<128x128xf32, #tpu.memory_space<vmem>>, %arg3: memref<128x128xf32, #tpu.memory_space<vmem>>, %arg4: memref<128x128xf32, #tpu.memory_space<vmem>>, %arg5: memref<128x128xf32, #tpu.memory_space<vmem>>, %arg6: memref<128x128xf32, #tpu.memory_space<vmem>>, %arg7: memref<128x128xf32, #tpu.memory_space<vmem>>) attributes {dimension_semantics = [#tpu.dimension_semantics<parallel>, #tpu.dimension_semantics<arbitrary>], iteration_bounds = array<i64: 1, 1>, scalar_prefetch = 0 : i64, scratch_operands = 2 : i64, tpu.core_type = #tpu.core_type<tc>, window_params = [{transform_indices = @transform_0, window_bounds = array<i64: 128, 128>}, {transform_indices = @transform_1, window_bounds = array<i64: 128, 128>}, {transform_indices = @transform_2, window_bounds = array<i64: 128, 128>}, {transform_indices = @transform_3, window_bounds = array<i64: 128, 128>}]} {
    %c0_i32 = arith.constant 0 : i32
    %0 = arith.cmpi eq, %arg1, %c0_i32 : i32
    %1 = arith.extui %0 : i1 to i32
    %c0_i32_0 = arith.constant 0 : i32
    %2 = arith.cmpi ne, %1, %c0_i32_0 : i32
    scf.if %2 {
      %cst_17 = arith.constant 0.000000e+00 : f32
      %18 = vector.broadcast %cst_17 : f32 to vector<128x128xf32>
      %c0_18 = arith.constant 0 : index
      %c0_19 = arith.constant 0 : index
      %19 = vector.load %arg6[%c0_18, %c0_19] : memref<128x128xf32, #tpu.memory_space<vmem>>, vector<128x128xf32>
      tpu.vector_store %arg6[%c0_18, %c0_19], %18 {strides = array<i32>} : memref<128x128xf32, #tpu.memory_space<vmem>>, vector<128x128xf32>,
      %cst_20 = arith.constant 0.000000e+00 : f32
      %20 = vector.broadcast %cst_20 : f32 to vector<128x128xf32>
      %c0_21 = arith.constant 0 : index
      %c0_22 = arith.constant 0 : index
      %21 = vector.load %arg7[%c0_21, %c0_22] : memref<128x128xf32, #tpu.memory_space<vmem>>, vector<128x128xf32>
      tpu.vector_store %arg7[%c0_21, %c0_22], %20 {strides = array<i32>} : memref<128x128xf32, #tpu.memory_space<vmem>>, vector<128x128xf32>,
    } else {
    }
    %c0 = arith.constant 0 : index
    %c0_1 = arith.constant 0 : index
    %3 = vector.load %arg2[%c0, %c0_1] : memref<128x128xf32, #tpu.memory_space<vmem>>, vector<128x128xf32>
    %c0_2 = arith.constant 0 : index
    %c0_3 = arith.constant 0 : index
    %4 = vector.load %arg3[%c0_2, %c0_3] : memref<128x128xf32, #tpu.memory_space<vmem>>, vector<128x128xf32>
    %cst = arith.constant dense<0.000000e+00> : vector<128x128xf32>
    %5 = tpu.matmul %3, %4, %cst {dimension_numbers = #tpu.dot_dimension_numbers<[1], [1], [0], [0], [0, 0, 1, 0], [], []>} : vector<128x128xf32>, vector<128x128xf32>, vector<128x128xf32> -> vector<128x128xf32>
    %c0_4 = arith.constant 0 : index
    %c0_5 = arith.constant 0 : index
    %6 = vector.load %arg7[%c0_4, %c0_5] : memref<128x128xf32, #tpu.memory_space<vmem>>, vector<128x128xf32>
    %7 = arith.mulf %5, %5 : vector<128x128xf32>
    %8 = arith.addf %6, %7 : vector<128x128xf32>
    %c0_6 = arith.constant 0 : index
    %c0_7 = arith.constant 0 : index
    %9 = vector.load %arg7[%c0_6, %c0_7] : memref<128x128xf32, #tpu.memory_space<vmem>>, vector<128x128xf32>
    tpu.vector_store %arg7[%c0_6, %c0_7], %8 {strides = array<i32>} : memref<128x128xf32, #tpu.memory_space<vmem>>, vector<128x128xf32>,
    %c0_8 = arith.constant 0 : index
    %c0_9 = arith.constant 0 : index
    %10 = vector.load %arg6[%c0_8, %c0_9] : memref<128x128xf32, #tpu.memory_space<vmem>>, vector<128x128xf32>
    %c0_10 = arith.constant 0 : index
    %c0_11 = arith.constant 0 : index
    %11 = vector.load %arg4[%c0_10, %c0_11] : memref<128x128xf32, #tpu.memory_space<vmem>>, vector<128x128xf32>
    %cst_12 = arith.constant dense<0.000000e+00> : vector<128x128xf32>
    %12 = tpu.matmul %5, %11, %cst_12 {dimension_numbers = #tpu.dot_dimension_numbers<[1], [0], [0], [1], [0, 0, 1, 1], [], []>} : vector<128x128xf32>, vector<128x128xf32>, vector<128x128xf32> -> vector<128x128xf32>
    %13 = arith.addf %10, %12 : vector<128x128xf32>
    %c0_13 = arith.constant 0 : index
    %c0_14 = arith.constant 0 : index
    %14 = vector.load %arg6[%c0_13, %c0_14] : memref<128x128xf32, #tpu.memory_space<vmem>>, vector<128x128xf32>
    tpu.vector_store %arg6[%c0_13, %c0_14], %13 {strides = array<i32>} : memref<128x128xf32, #tpu.memory_space<vmem>>, vector<128x128xf32>,
    %c0_i32_15 = arith.constant 0 : i32
    %15 = arith.cmpi eq, %arg1, %c0_i32_15 : i32
    %16 = arith.extui %15 : i1 to i32
    %c0_i32_16 = arith.constant 0 : i32
    %17 = arith.cmpi ne, %16, %c0_i32_16 : i32
    scf.if %17 {
      %c0_17 = arith.constant 0 : index
      %c0_18 = arith.constant 0 : index
      %18 = vector.load %arg7[%c0_17, %c0_18] : memref<128x128xf32, #tpu.memory_space<vmem>>, vector<128x128xf32>
      %cst_19 = arith.constant dense<0.000000e+00> : vector<128xf32>
      %19 = vector.multi_reduction <add>, %18, %cst_19 [1] : vector<128x128xf32> to vector<128xf32>
      %20 = vector.shape_cast %19 : vector<128xf32> to vector<128x1xf32>
      %cst_20 = arith.constant 1.000000e-24 : f32
      %21 = vector.broadcast %cst_20 : f32 to vector<128x1xf32>
      %22 = arith.maximumf %20, %21 : vector<128x1xf32>
      %23 = math.rsqrt %22 : vector<128x1xf32>
      %c0_21 = arith.constant 0 : index
      %c0_22 = arith.constant 0 : index
      %24 = vector.load %arg6[%c0_21, %c0_22] : memref<128x128xf32, #tpu.memory_space<vmem>>, vector<128x128xf32>
      %25 = vector.broadcast %23 : vector<128x1xf32> to vector<128x128xf32>
      %26 = arith.mulf %24, %25 : vector<128x128xf32>
      %cst_23 = arith.constant 0.000000e+00 : f32
      %27 = vector.broadcast %cst_23 : f32 to vector<128x128xf32>
      %28 = arith.cmpf ogt, %26, %27 : vector<128x128xf32>
      %cst_24 = arith.constant 0.000000e+00 : f32
      %29 = vector.broadcast %cst_24 : f32 to vector<128x128xf32>
      %30 = arith.minimumf %26, %29 : vector<128x128xf32>
      %31 = math.exp %30 : vector<128x128xf32>
      %cst_25 = arith.constant 1.000000e+00 : f32
      %32 = vector.broadcast %cst_25 : f32 to vector<128x128xf32>
      %33 = arith.subf %31, %32 : vector<128x128xf32>
      %34 = arith.select %28, %26, %33 : vector<128x128xi1>, vector<128x128xf32>
      %c0_26 = arith.constant 0 : index
      %c0_27 = arith.constant 0 : index
      %35 = vector.load %arg5[%c0_26, %c0_27] : memref<128x128xf32, #tpu.memory_space<vmem>>, vector<128x128xf32>
      tpu.vector_store %arg5[%c0_26, %c0_27], %34 {strides = array<i32>} : memref<128x128xf32, #tpu.memory_space<vmem>>, vector<128x128xf32>,
    } else {
    }
    return
  }
  func.func @transform_0(%arg0: i32, %arg1: i32) -> (i32, i32) {
    %c0_i32 = arith.constant 0 : i32
    %c0_i32_0 = arith.constant 0 : i32
    return %arg0, %c0_i32 : i32, i32
  }
  func.func @transform_1(%arg0: i32, %arg1: i32) -> (i32, i32) {
    %c0_i32 = arith.constant 0 : i32
    %c0_i32_0 = arith.constant 0 : i32
    return %arg1, %c0_i32 : i32, i32
  }
  func.func @transform_2(%arg0: i32, %arg1: i32) -> (i32, i32) {
    %c0_i32 = arith.constant 0 : i32
    %c0_i32_0 = arith.constant 0 : i32
    return %arg1, %c0_i32 : i32, i32
  }
  func.func @transform_3(%arg0: i32, %arg1: i32) -> (i32, i32) {
    %c0_i32 = arith.constant 0 : i32
    %c0_i32_0 = arith.constant 0 : i32
    return %arg0, %c0_i32 : i32, i32
  }
}

</mosaic_0001>

<llo_original>
// kernel: global_self_attention.1
$region0: #{global_self_attention.1}
  #allocation0 [shape = 'u32[]', space=smem, size = 0x4, offset = 0x4, fixed_abs, tag = 'smem constant byte address 0x4 - core index']
  #allocation1 [shape = 'u32[144,128]{1,0:T(1,128)}', space=vmem, size = 0x12000, scoped, tag = 'internal scratch']
  #allocation2 [shape = 'f32[128,128]{1,0:T(8,128)}', space=vmem, size = 0x10000, scoped, tag = 'scratch operand']
  #allocation3 [shape = 'f32[128,128]{1,0:T(8,128)}', space=vmem, size = 0x10000, scoped, tag = 'scratch operand']
  %s0 = inlined_call_operand.vmem [shape: f32[128,128], index: 0, kind: input, shape index: {}]
  %s1 = inlined_call_operand.vmem [shape: f32[128,128], index: 1, kind: input, shape index: {}]
  %s2 = inlined_call_operand.vmem [shape: f32[128,128], index: 2, kind: input, shape index: {}]
  %s3 = inlined_call_operand.vmem [shape: f32[128,128], index: 3, kind: output, shape index: {}]
  %s4 = sld [smem:[#allocation0]]
  $region30: #{global_self_attention.1} parent=0
    _
  %s6 = ssub.s32 1, %s4
  %s7 = scalar_select 0, %s6, %s4
  // Predicated region
  $region2: #{global_self_attention.1} parent=0 // pred_check
    _
  $region3: #{global_self_attention.1} parent=0 // pred_check_branch
    %9 = sbr.rel (0) target = $region5
  $region4: #{global_self_attention.1} parent=0 // pred_region
    _
  $region5: #{global_self_attention.1} parent=0 // pred_fallthru
    _
  // Predicated region
  $region6: #{global_self_attention.1} parent=0 // pred_check
    _
  $region7: #{global_self_attention.1} parent=0 // pred_check_branch
    %11 = sbr.rel (0) target = $region9
  $region8: #{global_self_attention.1} parent=0 // pred_region
    _
  $region9: #{global_self_attention.1} parent=0 // pred_fallthru
    _
  // Predicated region
  $region10: #{global_self_attention.1} parent=0 // pred_check
    _
  $region11: #{global_self_attention.1} parent=0 // pred_check_branch
    %13 = sbr.rel (0) target = $region13
  $region12: #{global_self_attention.1} parent=0 // pred_region
    _
  $region13: #{global_self_attention.1} parent=0 // pred_fallthru
    _
  %p14 = scmp.eq.s32.totalorder 0, 0
  // Predicated region
  $region14: #{global_self_attention.1} parent=0 // pred_check
    %p15 = pneg %p14
  $region15: #{global_self_attention.1} parent=0 // pred_check_branch
    %17 = sbr.rel (%p15) target = $region17
  $region16: #{global_self_attention.1} parent=0 // pred_region
    %18 = vst [vmem:[#allocation2] sm:$0xff] 0.0
    %19 = vst [vmem:[#allocation2 + $0x8] sm:$0xff] 0.0
    %20 = vst [vmem:[#allocation2 + $0x10] sm:$0xff] 0.0
    %21 = vst [vmem:[#allocation2 + $0x18] sm:$0xff] 0.0
    %22 = vst [vmem:[#allocation2 + $0x20] sm:$0xff] 0.0
    %23 = vst [vmem:[#allocation2 + $0x28] sm:$0xff] 0.0
    %24 = vst [vmem:[#allocation2 + $0x30] sm:$0xff] 0.0
    %25 = vst [vmem:[#allocation2 + $0x38] sm:$0xff] 0.0
    %26 = vst [vmem:[#allocation2 + $0x40] sm:$0xff] 0.0
    %27 = vst [vmem:[#allocation2 + $0x48] sm:$0xff] 0.0
    %28 = vst [vmem:[#allocation2 + $0x50] sm:$0xff] 0.0
    %29 = vst [vmem:[#allocation2 + $0x58] sm:$0xff] 0.0
    %30 = vst [vmem:[#allocation2 + $0x60] sm:$0xff] 0.0
    %31 = vst [vmem:[#allocation2 + $0x68] sm:$0xff] 0.0
    %32 = vst [vmem:[#allocation2 + $0x70] sm:$0xff] 0.0
    %33 = vst [vmem:[#allocation2 + $0x78] sm:$0xff] 0.0
    %34 = vst [vmem:[#allocation3] sm:$0xff] 0.0
    %35 = vst [vmem:[#allocation3 + $0x8] sm:$0xff] 0.0
    %36 = vst [vmem:[#allocation3 + $0x10] sm:$0xff] 0.0
    %37 = vst [vmem:[#allocation3 + $0x18] sm:$0xff] 0.0
    %38 = vst [vmem:[#allocation3 + $0x20] sm:$0xff] 0.0
    %39 = vst [vmem:[#allocation3 + $0x28] sm:$0xff] 0.0
    %40 = vst [vmem:[#allocation3 + $0x30] sm:$0xff] 0.0
    %41 = vst [vmem:[#allocation3 + $0x38] sm:$0xff] 0.0
    %42 = vst [vmem:[#allocation3 + $0x40] sm:$0xff] 0.0
    %43 = vst [vmem:[#allocation3 + $0x48] sm:$0xff] 0.0
    %44 = vst [vmem:[#allocation3 + $0x50] sm:$0xff] 0.0
    %45 = vst [vmem:[#allocation3 + $0x58] sm:$0xff] 0.0
    %46 = vst [vmem:[#allocation3 + $0x60] sm:$0xff] 0.0
    %47 = vst [vmem:[#allocation3 + $0x68] sm:$0xff] 0.0
    %48 = vst [vmem:[#allocation3 + $0x70] sm:$0xff] 0.0
    %49 = vst [vmem:[#allocation3 + $0x78] sm:$0xff] 0.0
  $region17: #{global_self_attention.1} parent=0 // pred_fallthru
    _
  %v50 = vld [vmem:[%s0] sm:$0xff]
  %v51 = vld [vmem:[%s0 + $0x8] sm:$0xff]
  %v52 = vld [vmem:[%s0 + $0x10] sm:$0xff]
  %v53 = vld [vmem:[%s0 + $0x18] sm:$0xff]
  %v54 = vld [vmem:[%s0 + $0x20] sm:$0xff]
  %v55 = vld [vmem:[%s0 + $0x28] sm:$0xff]
  %v56 = vld [vmem:[%s0 + $0x30] sm:$0xff]
  %v57 = vld [vmem:[%s0 + $0x38] sm:$0xff]
  %v58 = vld [vmem:[%s0 + $0x40] sm:$0xff]
  %v59 = vld [vmem:[%s0 + $0x48] sm:$0xff]
  %v60 = vld [vmem:[%s0 + $0x50] sm:$0xff]
  %v61 = vld [vmem:[%s0 + $0x58] sm:$0xff]
  %v62 = vld [vmem:[%s0 + $0x60] sm:$0xff]
  %v63 = vld [vmem:[%s0 + $0x68] sm:$0xff]
  %v64 = vld [vmem:[%s0 + $0x70] sm:$0xff]
  %v65 = vld [vmem:[%s0 + $0x78] sm:$0xff]
  %v66 = vld [vmem:[%s1] sm:$0xff]
  %v67 = vld [vmem:[%s1 + $0x8] sm:$0xff]
  %v68 = vld [vmem:[%s1 + $0x10] sm:$0xff]
  %v69 = vld [vmem:[%s1 + $0x18] sm:$0xff]
  %v70 = vld [vmem:[%s1 + $0x20] sm:$0xff]
  %v71 = vld [vmem:[%s1 + $0x28] sm:$0xff]
  %v72 = vld [vmem:[%s1 + $0x30] sm:$0xff]
  %v73 = vld [vmem:[%s1 + $0x38] sm:$0xff]
  %v74 = vld [vmem:[%s1 + $0x40] sm:$0xff]
  %v75 = vld [vmem:[%s1 + $0x48] sm:$0xff]
  %v76 = vld [vmem:[%s1 + $0x50] sm:$0xff]
  %v77 = vld [vmem:[%s1 + $0x58] sm:$0xff]
  %v78 = vld [vmem:[%s1 + $0x60] sm:$0xff]
  %v79 = vld [vmem:[%s1 + $0x68] sm:$0xff]
  %v80 = vld [vmem:[%s1 + $0x70] sm:$0xff]
  %v81 = vld [vmem:[%s1 + $0x78] sm:$0xff]
  %82 = vmatprep.subr.mxu0 0.0
  %83 = vmatpush1.xpose.msra.mxu0 %v66
  %84 = vmatprep.subr.mxu0 0.0
  %85 = vmatpush1.xpose.msra.mxu0 %v67
  %86 = vmatprep.subr.mxu0 0.0
  %87 = vmatpush1.xpose.msra.mxu0 %v68
  %88 = vmatprep.subr.mxu0 0.0
  %89 = vmatpush1.xpose.msra.mxu0 %v69
  %90 = vmatprep.subr.mxu0 0.0
  %91 = vmatpush1.xpose.msra.mxu0 %v70
  %92 = vmatprep.subr.mxu0 0.0
  %93 = vmatpush1.xpose.msra.mxu0 %v71
  %94 = vmatprep.subr.mxu0 0.0
  %95 = vmatpush1.xpose.msra.mxu0 %v72
  %96 = vmatprep.subr.mxu0 0.0
  %97 = vmatpush1.xpose.msra.mxu0 %v73
  %98 = vmatprep.subr.mxu0 0.0
  %99 = vmatpush1.xpose.msra.mxu0 %v74
  %100 = vmatprep.subr.mxu0 0.0
  %101 = vmatpush1.xpose.msra.mxu0 %v75
  %102 = vmatprep.subr.mxu0 0.0
  %103 = vmatpush1.xpose.msra.mxu0 %v76
  %104 = vmatprep.subr.mxu0 0.0
  %105 = vmatpush1.xpose.msra.mxu0 %v77
  %106 = vmatprep.subr.mxu0 0.0
  %107 = vmatpush1.xpose.msra.mxu0 %v78
  %108 = vmatprep.subr.mxu0 0.0
  %109 = vmatpush1.xpose.msra.mxu0 %v79
  %110 = vmatprep.subr.mxu0 0.0
  %111 = vmatpush1.xpose.msra.mxu0 %v80
  %112 = vmatprep.subr.mxu0 0.0
  %113 = vmatpush1.xpose.msra.mxu0 %v81
  %114 = vmatprep.subr.mxu0 0.0
  %115 = vmatpush1.xpose.msra.mxu0 0.0
  %116 = vmatprep.subr.mxu0 0.0
  %117 = vmatpush1.xpose.msra.mxu0 0.0
  %118 = vmatprep.subr.mxu0 0.0
  %119 = vmatpush1.xpose.msra.mxu0 0.0
  %120 = vmatprep.subr.mxu0 0.0
  %121 = vmatpush1.xpose.msra.mxu0 0.0
  %122 = vmatprep.subr.mxu0 0.0
  %123 = vmatpush1.xpose.msra.mxu0 0.0
  %124 = vmatprep.subr.mxu0 0.0
  %125 = vmatpush1.xpose.msra.mxu0 0.0
  %126 = vmatprep.subr.mxu0 0.0
  %127 = vmatpush1.xpose.msra.mxu0 0.0
  %128 = vmatprep.subr.mxu0 0.0
  %129 = vmatpush1.xpose.msra.mxu0 0.0
  %130 = vmatprep.subr.mxu0 0.0
  %131 = vmatpush1.xpose.msra.mxu0 0.0
  %132 = vmatprep.subr.mxu0 0.0
  %133 = vmatpush1.xpose.msra.mxu0 0.0
  %134 = vmatprep.subr.mxu0 0.0
  %135 = vmatpush1.xpose.msra.mxu0 0.0
  %136 = vmatprep.subr.mxu0 0.0
  %137 = vmatpush1.xpose.msra.mxu0 0.0
  %138 = vmatprep.subr.mxu0 0.0
  %139 = vmatpush1.xpose.msra.mxu0 0.0
  %140 = vmatprep.subr.mxu0 0.0
  %141 = vmatpush1.xpose.msra.mxu0 0.0
  %142 = vmatprep.subr.mxu0 0.0
  %143 = vmatpush1.xpose.msra.mxu0 0.0
  %144 = vmatprep.subr.mxu0 0.0
  %145 = vmatpush1.xpose.msra.mxu0 0.0
  %146 = vmatprep.mubr.f32.mxu0 0.0
  %147 = vmatmul.mubr.f32.gmra.mrb[0].mxu0 %v50
  %v148 = vpop.f32.mrb[0].mxu0
  %v149 = vadd.f32 0.0, %v148
  %v150 = vpop.f32.mrb[0].mxu0
  %151 = vmatprep.mubr.f32.mxu0 0.0
  %152 = vmatmul.mubr.f32.gmra.mrb[0].mxu0 %v51
  %v153 = vpop.f32.mrb[0].mxu0
  %v154 = vadd.f32 0.0, %v153
  %v155 = vpop.f32.mrb[0].mxu0
  %156 = vmatprep.mubr.f32.mxu0 0.0
  %157 = vmatmul.mubr.f32.gmra.mrb[0].mxu0 %v52
  %v158 = vpop.f32.mrb[0].mxu0
  %v159 = vadd.f32 0.0, %v158
  %v160 = vpop.f32.mrb[0].mxu0
  %161 = vmatprep.mubr.f32.mxu0 0.0
  %162 = vmatmul.mubr.f32.gmra.mrb[0].mxu0 %v53
  %v163 = vpop.f32.mrb[0].mxu0
  %v164 = vadd.f32 0.0, %v163
  %v165 = vpop.f32.mrb[0].mxu0
  %166 = vmatprep.mubr.f32.mxu0 0.0
  %167 = vmatmul.mubr.f32.gmra.mrb[0].mxu0 %v54
  %v168 = vpop.f32.mrb[0].mxu0
  %v169 = vadd.f32 0.0, %v168
  %v170 = vpop.f32.mrb[0].mxu0
  %171 = vmatprep.mubr.f32.mxu0 0.0
  %172 = vmatmul.mubr.f32.gmra.mrb[0].mxu0 %v55
  %v173 = vpop.f32.mrb[0].mxu0
  %v174 = vadd.f32 0.0, %v173
  %v175 = vpop.f32.mrb[0].mxu0
  %176 = vmatprep.mubr.f32.mxu0 0.0
  %177 = vmatmul.mubr.f32.gmra.mrb[0].mxu0 %v56
  %v178 = vpop.f32.mrb[0].mxu0
  %v179 = vadd.f32 0.0, %v178
  %v180 = vpop.f32.mrb[0].mxu0
  %181 = vmatprep.mubr.f32.mxu0 0.0
  %182 = vmatmul.mubr.f32.gmra.mrb[0].mxu0 %v57
  %v183 = vpop.f32.mrb[0].mxu0
  %v184 = vadd.f32 0.0, %v183
  %v185 = vpop.f32.mrb[0].mxu0
  %186 = vmatprep.mubr.f32.mxu0 0.0
  %187 = vmatmul.mubr.f32.gmra.mrb[0].mxu0 %v58
  %v188 = vpop.f32.mrb[0].mxu0
  %v189 = vadd.f32 0.0, %v188
  %v190 = vpop.f32.mrb[0].mxu0
  %191 = vmatprep.mubr.f32.mxu0 0.0
  %192 = vmatmul.mubr.f32.gmra.mrb[0].mxu0 %v59
  %v193 = vpop.f32.mrb[0].mxu0
  %v194 = vadd.f32 0.0, %v193
  %v195 = vpop.f32.mrb[0].mxu0
  %196 = vmatprep.mubr.f32.mxu0 0.0
  %197 = vmatmul.mubr.f32.gmra.mrb[0].mxu0 %v60
  %v198 = vpop.f32.mrb[0].mxu0
  %v199 = vadd.f32 0.0, %v198
  %v200 = vpop.f32.mrb[0].mxu0
  %201 = vmatprep.mubr.f32.mxu0 0.0
  %202 = vmatmul.mubr.f32.gmra.mrb[0].mxu0 %v61
  %v203 = vpop.f32.mrb[0].mxu0
  %v204 = vadd.f32 0.0, %v203
  %v205 = vpop.f32.mrb[0].mxu0
  %206 = vmatprep.mubr.f32.mxu0 0.0
  %207 = vmatmul.mubr.f32.gmra.mrb[0].mxu0 %v62
  %v208 = vpop.f32.mrb[0].mxu0
  %v209 = vadd.f32 0.0, %v208
  %v210 = vpop.f32.mrb[0].mxu0
  %211 = vmatprep.mubr.f32.mxu0 0.0
  %212 = vmatmul.mubr.f32.gmra.mrb[0].mxu0 %v63
  %v213 = vpop.f32.mrb[0].mxu0
  %v214 = vadd.f32 0.0, %v213
  %v215 = vpop.f32.mrb[0].mxu0
  %216 = vmatprep.mubr.f32.mxu0 0.0
  %217 = vmatmul.mubr.f32.gmra.mrb[0].mxu0 %v64
  %v218 = vpop.f32.mrb[0].mxu0
  %v219 = vadd.f32 0.0, %v218
  %v220 = vpop.f32.mrb[0].mxu0
  %221 = vmatprep.mubr.f32.mxu0 0.0
  %222 = vmatmul.mubr.f32.gmra.mrb[0].mxu0 %v65
  %v223 = vpop.f32.mrb[0].mxu0
  %v224 = vadd.f32 0.0, %v223
  %v225 = vpop.f32.mrb[0].mxu0
  %226 = vdwg.mxu0
  %v227 = vld [vmem:[#allocation3] sm:$0xff]
  %v228 = vld [vmem:[#allocation3 + $0x8] sm:$0xff]
  %v229 = vld [vmem:[#allocation3 + $0x10] sm:$0xff]
  %v230 = vld [vmem:[#allocation3 + $0x18] sm:$0xff]
  %v231 = vld [vmem:[#allocation3 + $0x20] sm:$0xff]
  %v232 = vld [vmem:[#allocation3 + $0x28] sm:$0xff]
  %v233 = vld [vmem:[#allocation3 + $0x30] sm:$0xff]
  %v234 = vld [vmem:[#allocation3 + $0x38] sm:$0xff]
  %v235 = vld [vmem:[#allocation3 + $0x40] sm:$0xff]
  %v236 = vld [vmem:[#allocation3 + $0x48] sm:$0xff]
  %v237 = vld [vmem:[#allocation3 + $0x50] sm:$0xff]
  %v238 = vld [vmem:[#allocation3 + $0x58] sm:$0xff]
  %v239 = vld [vmem:[#allocation3 + $0x60] sm:$0xff]
  %v240 = vld [vmem:[#allocation3 + $0x68] sm:$0xff]
  %v241 = vld [vmem:[#allocation3 + $0x70] sm:$0xff]
  %v242 = vld [vmem:[#allocation3 + $0x78] sm:$0xff]
  %v243 = vmul.f32 %v149, %v149
  %v244 = vmul.f32 %v154, %v154
  %v245 = vmul.f32 %v159, %v159
  %v246 = vmul.f32 %v164, %v164
  %v247 = vmul.f32 %v169, %v169
  %v248 = vmul.f32 %v174, %v174
  %v249 = vmul.f32 %v179, %v179
  %v250 = vmul.f32 %v184, %v184
  %v251 = vmul.f32 %v189, %v189
  %v252 = vmul.f32 %v194, %v194
  %v253 = vmul.f32 %v199, %v199
  %v254 = vmul.f32 %v204, %v204
  %v255 = vmul.f32 %v209, %v209
  %v256 = vmul.f32 %v214, %v214
  %v257 = vmul.f32 %v219, %v219
  %v258 = vmul.f32 %v224, %v224
  %v259 = vadd.f32 %v227, %v243
  %v260 = vadd.f32 %v228, %v244
  %v261 = vadd.f32 %v229, %v245
  %v262 = vadd.f32 %v230, %v246
  %v263 = vadd.f32 %v231, %v247
  %v264 = vadd.f32 %v232, %v248
  %v265 = vadd.f32 %v233, %v249
  %v266 = vadd.f32 %v234, %v250
  %v267 = vadd.f32 %v235, %v251
  %v268 = vadd.f32 %v236, %v252
  %v269 = vadd.f32 %v237, %v253
  %v270 = vadd.f32 %v238, %v254
  %v271 = vadd.f32 %v239, %v255
  %v272 = vadd.f32 %v240, %v256
  %v273 = vadd.f32 %v241, %v257
  %v274 = vadd.f32 %v242, %v258
  %275 = vst [vmem:[#allocation3] sm:$0xff] %v259
  %276 = vst [vmem:[#allocation3 + $0x8] sm:$0xff] %v260
  %277 = vst [vmem:[#allocation3 + $0x10] sm:$0xff] %v261
  %278 = vst [vmem:[#allocation3 + $0x18] sm:$0xff] %v262
  %279 = vst [vmem:[#allocation3 + $0x20] sm:$0xff] %v263
  %280 = vst [vmem:[#allocation3 + $0x28] sm:$0xff] %v264
  %281 = vst [vmem:[#allocation3 + $0x30] sm:$0xff] %v265
  %282 = vst [vmem:[#allocation3 + $0x38] sm:$0xff] %v266
  %283 = vst [vmem:[#allocation3 + $0x40] sm:$0xff] %v267
  %284 = vst [vmem:[#allocation3 + $0x48] sm:$0xff] %v268
  %285 = vst [vmem:[#allocation3 + $0x50] sm:$0xff] %v269
  %286 = vst [vmem:[#allocation3 + $0x58] sm:$0xff] %v270
  %287 = vst [vmem:[#allocation3 + $0x60] sm:$0xff] %v271
  %288 = vst [vmem:[#allocation3 + $0x68] sm:$0xff] %v272
  %289 = vst [vmem:[#allocation3 + $0x70] sm:$0xff] %v273
  %290 = vst [vmem:[#allocation3 + $0x78] sm:$0xff] %v274
  %v291 = vld [vmem:[#allocation2] sm:$0xff]
  %v292 = vld [vmem:[#allocation2 + $0x8] sm:$0xff]
  %v293 = vld [vmem:[#allocation2 + $0x10] sm:$0xff]
  %v294 = vld [vmem:[#allocation2 + $0x18] sm:$0xff]
  %v295 = vld [vmem:[#allocation2 + $0x20] sm:$0xff]
  %v296 = vld [vmem:[#allocation2 + $0x28] sm:$0xff]
  %v297 = vld [vmem:[#allocation2 + $0x30] sm:$0xff]
  %v298 = vld [vmem:[#allocation2 + $0x38] sm:$0xff]
  %v299 = vld [vmem:[#allocation2 + $0x40] sm:$0xff]
  %v300 = vld [vmem:[#allocation2 + $0x48] sm:$0xff]
  %v301 = vld [vmem:[#allocation2 + $0x50] sm:$0xff]
  %v302 = vld [vmem:[#allocation2 + $0x58] sm:$0xff]
  %v303 = vld [vmem:[#allocation2 + $0x60] sm:$0xff]
  %v304 = vld [vmem:[#allocation2 + $0x68] sm:$0xff]
  %v305 = vld [vmem:[#allocation2 + $0x70] sm:$0xff]
  %v306 = vld [vmem:[#allocation2 + $0x78] sm:$0xff]
  %v307 = vld [vmem:[%s2] sm:$0xff]
  %v308 = vld [vmem:[%s2 + $0x8] sm:$0xff]
  %v309 = vld [vmem:[%s2 + $0x10] sm:$0xff]
  %v310 = vld [vmem:[%s2 + $0x18] sm:$0xff]
  %v311 = vld [vmem:[%s2 + $0x20] sm:$0xff]
  %v312 = vld [vmem:[%s2 + $0x28] sm:$0xff]
  %v313 = vld [vmem:[%s2 + $0x30] sm:$0xff]
  %v314 = vld [vmem:[%s2 + $0x38] sm:$0xff]
  %v315 = vld [vmem:[%s2 + $0x40] sm:$0xff]
  %v316 = vld [vmem:[%s2 + $0x48] sm:$0xff]
  %v317 = vld [vmem:[%s2 + $0x50] sm:$0xff]
  %v318 = vld [vmem:[%s2 + $0x58] sm:$0xff]
  %v319 = vld [vmem:[%s2 + $0x60] sm:$0xff]
  %v320 = vld [vmem:[%s2 + $0x68] sm:$0xff]
  %v321 = vld [vmem:[%s2 + $0x70] sm:$0xff]
  %v322 = vld [vmem:[%s2 + $0x78] sm:$0xff]
  %323 = vmatprep.subr.mxu0 0.0
  %324 = vmatpush1.msra.mxu0 %v307
  %325 = vmatprep.subr.mxu0 0.0
  %326 = vmatpush1.msra.mxu0 %v308
  %327 = vmatprep.subr.mxu0 0.0
  %328 = vmatpush1.msra.mxu0 %v309
  %329 = vmatprep.subr.mxu0 0.0
  %330 = vmatpush1.msra.mxu0 %v310
  %331 = vmatprep.subr.mxu0 0.0
  %332 = vmatpush1.msra.mxu0 %v311
  %333 = vmatprep.subr.mxu0 0.0
  %334 = vmatpush1.msra.mxu0 %v312
  %335 = vmatprep.subr.mxu0 0.0
  %336 = vmatpush1.msra.mxu0 %v313
  %337 = vmatprep.subr.mxu0 0.0
  %338 = vmatpush1.msra.mxu0 %v314
  %339 = vmatprep.subr.mxu0 0.0
  %340 = vmatpush1.msra.mxu0 %v315
  %341 = vmatprep.subr.mxu0 0.0
  %342 = vmatpush1.msra.mxu0 %v316
  %343 = vmatprep.subr.mxu0 0.0
  %344 = vmatpush1.msra.mxu0 %v317
  %345 = vmatprep.subr.mxu0 0.0
  %346 = vmatpush1.msra.mxu0 %v318
  %347 = vmatprep.subr.mxu0 0.0
  %348 = vmatpush1.msra.mxu0 %v319
  %349 = vmatprep.subr.mxu0 0.0
  %350 = vmatpush1.msra.mxu0 %v320
  %351 = vmatprep.subr.mxu0 0.0
  %352 = vmatpush1.msra.mxu0 %v321
  %353 = vmatprep.subr.mxu0 0.0
  %354 = vmatpush1.msra.mxu0 %v322
  %355 = vmatprep.subr.mxu0 0.0
  %356 = vmatpush1.msra.mxu0 0.0
  %357 = vmatprep.subr.mxu0 0.0
  %358 = vmatpush1.msra.mxu0 0.0
  %359 = vmatprep.subr.mxu0 0.0
  %360 = vmatpush1.msra.mxu0 0.0
  %361 = vmatprep.subr.mxu0 0.0
  %362 = vmatpush1.msra.mxu0 0.0
  %363 = vmatprep.subr.mxu0 0.0
  %364 = vmatpush1.msra.mxu0 0.0
  %365 = vmatprep.subr.mxu0 0.0
  %366 = vmatpush1.msra.mxu0 0.0
  %367 = vmatprep.subr.mxu0 0.0
  %368 = vmatpush1.msra.mxu0 0.0
  %369 = vmatprep.subr.mxu0 0.0
  %370 = vmatpush1.msra.mxu0 0.0
  %371 = vmatprep.subr.mxu0 0.0
  %372 = vmatpush1.msra.mxu0 0.0
  %373 = vmatprep.subr.mxu0 0.0
  %374 = vmatpush1.msra.mxu0 0.0
  %375 = vmatprep.subr.mxu0 0.0
  %376 = vmatpush1.msra.mxu0 0.0
  %377 = vmatprep.subr.mxu0 0.0
  %378 = vmatpush1.msra.mxu0 0.0
  %379 = vmatprep.subr.mxu0 0.0
  %380 = vmatpush1.msra.mxu0 0.0
  %381 = vmatprep.subr.mxu0 0.0
  %382 = vmatpush1.msra.mxu0 0.0
  %383 = vmatprep.subr.mxu0 0.0
  %384 = vmatpush1.msra.mxu0 0.0
  %385 = vmatprep.subr.mxu0 0.0
  %386 = vmatpush1.msra.mxu0 0.0
  %387 = vmatprep.mubr.f32.mxu0 0.0
  %388 = vmatmul.mubr.f32.gmra.mrb[0].mxu0 %v149
  %v389 = vpop.f32.mrb[0].mxu0
  %v390 = vadd.f32 0.0, %v389
  %v391 = vpop.f32.mrb[0].mxu0
  %392 = vmatprep.mubr.f32.mxu0 0.0
  %393 = vmatmul.mubr.f32.gmra.mrb[0].mxu0 %v154
  %v394 = vpop.f32.mrb[0].mxu0
  %v395 = vadd.f32 0.0, %v394
  %v396 = vpop.f32.mrb[0].mxu0
  %397 = vmatprep.mubr.f32.mxu0 0.0
  %398 = vmatmul.mubr.f32.gmra.mrb[0].mxu0 %v159
  %v399 = vpop.f32.mrb[0].mxu0
  %v400 = vadd.f32 0.0, %v399
  %v401 = vpop.f32.mrb[0].mxu0
  %402 = vmatprep.mubr.f32.mxu0 0.0
  %403 = vmatmul.mubr.f32.gmra.mrb[0].mxu0 %v164
  %v404 = vpop.f32.mrb[0].mxu0
  %v405 = vadd.f32 0.0, %v404
  %v406 = vpop.f32.mrb[0].mxu0
  %407 = vmatprep.mubr.f32.mxu0 0.0
  %408 = vmatmul.mubr.f32.gmra.mrb[0].mxu0 %v169
  %v409 = vpop.f32.mrb[0].mxu0
  %v410 = vadd.f32 0.0, %v409
  %v411 = vpop.f32.mrb[0].mxu0
  %412 = vmatprep.mubr.f32.mxu0 0.0
  %413 = vmatmul.mubr.f32.gmra.mrb[0].mxu0 %v174
  %v414 = vpop.f32.mrb[0].mxu0
  %v415 = vadd.f32 0.0, %v414
  %v416 = vpop.f32.mrb[0].mxu0
  %417 = vmatprep.mubr.f32.mxu0 0.0
  %418 = vmatmul.mubr.f32.gmra.mrb[0].mxu0 %v179
  %v419 = vpop.f32.mrb[0].mxu0
  %v420 = vadd.f32 0.0, %v419
  %v421 = vpop.f32.mrb[0].mxu0
  %422 = vmatprep.mubr.f32.mxu0 0.0
  %423 = vmatmul.mubr.f32.gmra.mrb[0].mxu0 %v184
  %v424 = vpop.f32.mrb[0].mxu0
  %v425 = vadd.f32 0.0, %v424
  %v426 = vpop.f32.mrb[0].mxu0
  %427 = vmatprep.mubr.f32.mxu0 0.0
  %428 = vmatmul.mubr.f32.gmra.mrb[0].mxu0 %v189
  %v429 = vpop.f32.mrb[0].mxu0
  %v430 = vadd.f32 0.0, %v429
  %v431 = vpop.f32.mrb[0].mxu0
  %432 = vmatprep.mubr.f32.mxu0 0.0
  %433 = vmatmul.mubr.f32.gmra.mrb[0].mxu0 %v194
  %v434 = vpop.f32.mrb[0].mxu0
  %v435 = vadd.f32 0.0, %v434
  %v436 = vpop.f32.mrb[0].mxu0
  %437 = vmatprep.mubr.f32.mxu0 0.0
  %438 = vmatmul.mubr.f32.gmra.mrb[0].mxu0 %v199
  %v439 = vpop.f32.mrb[0].mxu0
  %v440 = vadd.f32 0.0, %v439
  %v441 = vpop.f32.mrb[0].mxu0
  %442 = vmatprep.mubr.f32.mxu0 0.0
  %443 = vmatmul.mubr.f32.gmra.mrb[0].mxu0 %v204
  %v444 = vpop.f32.mrb[0].mxu0
  %v445 = vadd.f32 0.0, %v444
  %v446 = vpop.f32.mrb[0].mxu0
  %447 = vmatprep.mubr.f32.mxu0 0.0
  %448 = vmatmul.mubr.f32.gmra.mrb[0].mxu0 %v209
  %v449 = vpop.f32.mrb[0].mxu0
  %v450 = vadd.f32 0.0, %v449
  %v451 = vpop.f32.mrb[0].mxu0
  %452 = vmatprep.mubr.f32.mxu0 0.0
  %453 = vmatmul.mubr.f32.gmra.mrb[0].mxu0 %v214
  %v454 = vpop.f32.mrb[0].mxu0
  %v455 = vadd.f32 0.0, %v454
  %v456 = vpop.f32.mrb[0].mxu0
  %457 = vmatprep.mubr.f32.mxu0 0.0
  %458 = vmatmul.mubr.f32.gmra.mrb[0].mxu0 %v219
  %v459 = vpop.f32.mrb[0].mxu0
  %v460 = vadd.f32 0.0, %v459
  %v461 = vpop.f32.mrb[0].mxu0
  %462 = vmatprep.mubr.f32.mxu0 0.0
  %463 = vmatmul.mubr.f32.gmra.mrb[0].mxu0 %v224
  %v464 = vpop.f32.mrb[0].mxu0
  %v465 = vadd.f32 0.0, %v464
  %v466 = vpop.f32.mrb[0].mxu0
  %467 = vdwg.mxu0
  %v468 = vadd.f32 %v291, %v390
  %v469 = vadd.f32 %v292, %v395
  %v470 = vadd.f32 %v293, %v400
  %v471 = vadd.f32 %v294, %v405
  %v472 = vadd.f32 %v295, %v410
  %v473 = vadd.f32 %v296, %v415
  %v474 = vadd.f32 %v297, %v420
  %v475 = vadd.f32 %v298, %v425
  %v476 = vadd.f32 %v299, %v430
  %v477 = vadd.f32 %v300, %v435
  %v478 = vadd.f32 %v301, %v440
  %v479 = vadd.f32 %v302, %v445
  %v480 = vadd.f32 %v303, %v450
  %v481 = vadd.f32 %v304, %v455
  %v482 = vadd.f32 %v305, %v460
  %v483 = vadd.f32 %v306, %v465
  %484 = vst [vmem:[#allocation2] sm:$0xff] %v468
  %485 = vst [vmem:[#allocation2 + $0x8] sm:$0xff] %v469
  %486 = vst [vmem:[#allocation2 + $0x10] sm:$0xff] %v470
  %487 = vst [vmem:[#allocation2 + $0x18] sm:$0xff] %v471
  %488 = vst [vmem:[#allocation2 + $0x20] sm:$0xff] %v472
  %489 = vst [vmem:[#allocation2 + $0x28] sm:$0xff] %v473
  %490 = vst [vmem:[#allocation2 + $0x30] sm:$0xff] %v474
  %491 = vst [vmem:[#allocation2 + $0x38] sm:$0xff] %v475
  %492 = vst [vmem:[#allocation2 + $0x40] sm:$0xff] %v476
  %493 = vst [vmem:[#allocation2 + $0x48] sm:$0xff] %v477
  %494 = vst [vmem:[#allocation2 + $0x50] sm:$0xff] %v478
  %495 = vst [vmem:[#allocation2 + $0x58] sm:$0xff] %v479
  %496 = vst [vmem:[#allocation2 + $0x60] sm:$0xff] %v480
  %497 = vst [vmem:[#allocation2 + $0x68] sm:$0xff] %v481
  %498 = vst [vmem:[#allocation2 + $0x70] sm:$0xff] %v482
  %499 = vst [vmem:[#allocation2 + $0x78] sm:$0xff] %v483
  // Predicated region
  $region18: #{global_self_attention.1} parent=0 // pred_check
    %p500 = pneg %p14
  $region19: #{global_self_attention.1} parent=0 // pred_check_branch
    %502 = sbr.rel (%p500) target = $region21
  $region20: #{global_self_attention.1} parent=0 // pred_region
    %v503 = vld [vmem:[#allocation3] sm:$0xff]
    %v504 = vld [vmem:[#allocation3 + $0x8] sm:$0xff]
    %v505 = vld [vmem:[#allocation3 + $0x10] sm:$0xff]
    %v506 = vld [vmem:[#allocation3 + $0x18] sm:$0xff]
    %v507 = vld [vmem:[#allocation3 + $0x20] sm:$0xff]
    %v508 = vld [vmem:[#allocation3 + $0x28] sm:$0xff]
    %v509 = vld [vmem:[#allocation3 + $0x30] sm:$0xff]
    %v510 = vld [vmem:[#allocation3 + $0x38] sm:$0xff]
    %v511 = vld [vmem:[#allocation3 + $0x40] sm:$0xff]
    %v512 = vld [vmem:[#allocation3 + $0x48] sm:$0xff]
    %v513 = vld [vmem:[#allocation3 + $0x50] sm:$0xff]
    %v514 = vld [vmem:[#allocation3 + $0x58] sm:$0xff]
    %v515 = vld [vmem:[#allocation3 + $0x60] sm:$0xff]
    %v516 = vld [vmem:[#allocation3 + $0x68] sm:$0xff]
    %v517 = vld [vmem:[#allocation3 + $0x70] sm:$0xff]
    %v518 = vld [vmem:[#allocation3 + $0x78] sm:$0xff]
    %519 = vadd.xlane.f32.xlu0 %v503
    %v520 = vpop.xlane.xlu0 %519
    %521 = vadd.xlane.f32.xlu0 %v504
    %v522 = vpop.xlane.xlu0 %521
    %523 = vadd.xlane.f32.xlu0 %v505
    %v524 = vpop.xlane.xlu0 %523
    %525 = vadd.xlane.f32.xlu0 %v506
    %v526 = vpop.xlane.xlu0 %525
    %527 = vadd.xlane.f32.xlu0 %v507
    %v528 = vpop.xlane.xlu0 %527
    %529 = vadd.xlane.f32.xlu0 %v508
    %v530 = vpop.xlane.xlu0 %529
    %531 = vadd.xlane.f32.xlu0 %v509
    %v532 = vpop.xlane.xlu0 %531
    %533 = vadd.xlane.f32.xlu0 %v510
    %v534 = vpop.xlane.xlu0 %533
    %535 = vadd.xlane.f32.xlu0 %v511
    %v536 = vpop.xlane.xlu0 %535
    %537 = vadd.xlane.f32.xlu0 %v512
    %v538 = vpop.xlane.xlu0 %537
    %539 = vadd.xlane.f32.xlu0 %v513
    %v540 = vpop.xlane.xlu0 %539
    %541 = vadd.xlane.f32.xlu0 %v514
    %v542 = vpop.xlane.xlu0 %541
    %543 = vadd.xlane.f32.xlu0 %v515
    %v544 = vpop.xlane.xlu0 %543
    %545 = vadd.xlane.f32.xlu0 %v516
    %v546 = vpop.xlane.xlu0 %545
    %547 = vadd.xlane.f32.xlu0 %v517
    %v548 = vpop.xlane.xlu0 %547
    %549 = vadd.xlane.f32.xlu0 %v518
    %v550 = vpop.xlane.xlu0 %549
    %v551 = vmax.f32 %v520, 1e-24
    %v552 = vmax.f32 %v522, 1e-24
    %v553 = vmax.f32 %v524, 1e-24
    %v554 = vmax.f32 %v526, 1e-24
    %v555 = vmax.f32 %v528, 1e-24
    %v556 = vmax.f32 %v530, 1e-24
    %v557 = vmax.f32 %v532, 1e-24
    %v558 = vmax.f32 %v534, 1e-24
    %v559 = vmax.f32 %v536, 1e-24
    %v560 = vmax.f32 %v538, 1e-24
    %v561 = vmax.f32 %v540, 1e-24
    %v562 = vmax.f32 %v542, 1e-24
    %v563 = vmax.f32 %v544, 1e-24
    %v564 = vmax.f32 %v546, 1e-24
    %v565 = vmax.f32 %v548, 1e-24
    %v566 = vmax.f32 %v550, 1e-24
    %v567 = vrsqrt.pop %v551
    %v568 = vrsqrt.pop %v552
    %v569 = vrsqrt.pop %v553
    %v570 = vrsqrt.pop %v554
    %v571 = vrsqrt.pop %v555
    %v572 = vrsqrt.pop %v556
    %v573 = vrsqrt.pop %v557
    %v574 = vrsqrt.pop %v558
    %v575 = vrsqrt.pop %v559
    %v576 = vrsqrt.pop %v560
    %v577 = vrsqrt.pop %v561
    %v578 = vrsqrt.pop %v562
    %v579 = vrsqrt.pop %v563
    %v580 = vrsqrt.pop %v564
    %v581 = vrsqrt.pop %v565
    %v582 = vrsqrt.pop %v566
    %v583 = vld [vmem:[#allocation2] sm:$0xff]
    %v584 = vld [vmem:[#allocation2 + $0x8] sm:$0xff]
    %v585 = vld [vmem:[#allocation2 + $0x10] sm:$0xff]
    %v586 = vld [vmem:[#allocation2 + $0x18] sm:$0xff]
    %v587 = vld [vmem:[#allocation2 + $0x20] sm:$0xff]
    %v588 = vld [vmem:[#allocation2 + $0x28] sm:$0xff]
    %v589 = vld [vmem:[#allocation2 + $0x30] sm:$0xff]
    %v590 = vld [vmem:[#allocation2 + $0x38] sm:$0xff]
    %v591 = vld [vmem:[#allocation2 + $0x40] sm:$0xff]
    %v592 = vld [vmem:[#allocation2 + $0x48] sm:$0xff]
    %v593 = vld [vmem:[#allocation2 + $0x50] sm:$0xff]
    %v594 = vld [vmem:[#allocation2 + $0x58] sm:$0xff]
    %v595 = vld [vmem:[#allocation2 + $0x60] sm:$0xff]
    %v596 = vld [vmem:[#allocation2 + $0x68] sm:$0xff]
    %v597 = vld [vmem:[#allocation2 + $0x70] sm:$0xff]
    %v598 = vld [vmem:[#allocation2 + $0x78] sm:$0xff]
    %v599 = vmul.f32 %v583, %v567
    %v600 = vmul.f32 %v584, %v568
    %v601 = vmul.f32 %v585, %v569
    %v602 = vmul.f32 %v586, %v570
    %v603 = vmul.f32 %v587, %v571
    %v604 = vmul.f32 %v588, %v572
    %v605 = vmul.f32 %v589, %v573
    %v606 = vmul.f32 %v590, %v574
    %v607 = vmul.f32 %v591, %v575
    %v608 = vmul.f32 %v592, %v576
    %v609 = vmul.f32 %v593, %v577
    %v610 = vmul.f32 %v594, %v578
    %v611 = vmul.f32 %v595, %v579
    %v612 = vmul.f32 %v596, %v580
    %v613 = vmul.f32 %v597, %v581
    %v614 = vmul.f32 %v598, %v582
    %vm615 = vcmp.gt.f32.partialorder %v599, 0.0
    %vm616 = vcmp.gt.f32.partialorder %v600, 0.0
    %vm617 = vcmp.gt.f32.partialorder %v601, 0.0
    %vm618 = vcmp.gt.f32.partialorder %v602, 0.0
    %vm619 = vcmp.gt.f32.partialorder %v603, 0.0
    %vm620 = vcmp.gt.f32.partialorder %v604, 0.0
    %vm621 = vcmp.gt.f32.partialorder %v605, 0.0
    %vm622 = vcmp.gt.f32.partialorder %v606, 0.0
    %vm623 = vcmp.gt.f32.partialorder %v607, 0.0
    %vm624 = vcmp.gt.f32.partialorder %v608, 0.0
    %vm625 = vcmp.gt.f32.partialorder %v609, 0.0
    %vm626 = vcmp.gt.f32.partialorder %v610, 0.0
    %vm627 = vcmp.gt.f32.partialorder %v611, 0.0
    %vm628 = vcmp.gt.f32.partialorder %v612, 0.0
    %vm629 = vcmp.gt.f32.partialorder %v613, 0.0
    %vm630 = vcmp.gt.f32.partialorder %v614, 0.0
    %v631 = vmin.f32 %v599, 0.0
    %v632 = vmin.f32 %v600, 0.0
    %v633 = vmin.f32 %v601, 0.0
    %v634 = vmin.f32 %v602, 0.0
    %v635 = vmin.f32 %v603, 0.0
    %v636 = vmin.f32 %v604, 0.0
    %v637 = vmin.f32 %v605, 0.0
    %v638 = vmin.f32 %v606, 0.0
    %v639 = vmin.f32 %v607, 0.0
    %v640 = vmin.f32 %v608, 0.0
    %v641 = vmin.f32 %v609, 0.0
    %v642 = vmin.f32 %v610, 0.0
    %v643 = vmin.f32 %v611, 0.0
    %v644 = vmin.f32 %v612, 0.0
    %v645 = vmin.f32 %v613, 0.0
    %v646 = vmin.f32 %v614, 0.0
    %v647 = vmul.f32 %v631, 1.442695
    %v648 = vpow.pop %v647
    %v649 = vmul.f32 %v632, 1.442695
    %v650 = vpow.pop %v649
    %v651 = vmul.f32 %v633, 1.442695
    %v652 = vpow.pop %v651
    %v653 = vmul.f32 %v634, 1.442695
    %v654 = vpow.pop %v653
    %v655 = vmul.f32 %v635, 1.442695
    %v656 = vpow.pop %v655
    %v657 = vmul.f32 %v636, 1.442695
    %v658 = vpow.pop %v657
    %v659 = vmul.f32 %v637, 1.442695
    %v660 = vpow.pop %v659
    %v661 = vmul.f32 %v638, 1.442695
    %v662 = vpow.pop %v661
    %v663 = vmul.f32 %v639, 1.442695
    %v664 = vpow.pop %v663
    %v665 = vmul.f32 %v640, 1.442695
    %v666 = vpow.pop %v665
    %v667 = vmul.f32 %v641, 1.442695
    %v668 = vpow.pop %v667
    %v669 = vmul.f32 %v642, 1.442695
    %v670 = vpow.pop %v669
    %v671 = vmul.f32 %v643, 1.442695
    %v672 = vpow.pop %v671
    %v673 = vmul.f32 %v644, 1.442695
    %v674 = vpow.pop %v673
    %v675 = vmul.f32 %v645, 1.442695
    %v676 = vpow.pop %v675
    %v677 = vmul.f32 %v646, 1.442695
    %v678 = vpow.pop %v677
    %v679 = vsub.f32 %v648, 1.0
    %v680 = vsub.f32 %v650, 1.0
    %v681 = vsub.f32 %v652, 1.0
    %v682 = vsub.f32 %v654, 1.0
    %v683 = vsub.f32 %v656, 1.0
    %v684 = vsub.f32 %v658, 1.0
    %v685 = vsub.f32 %v660, 1.0
    %v686 = vsub.f32 %v662, 1.0
    %v687 = vsub.f32 %v664, 1.0
    %v688 = vsub.f32 %v666, 1.0
    %v689 = vsub.f32 %v668, 1.0
    %v690 = vsub.f32 %v670, 1.0
    %v691 = vsub.f32 %v672, 1.0
    %v692 = vsub.f32 %v674, 1.0
    %v693 = vsub.f32 %v676, 1.0
    %v694 = vsub.f32 %v678, 1.0
    %v695 = vsel %vm615, %v599, %v679
    %v696 = vsel %vm616, %v600, %v680
    %v697 = vsel %vm617, %v601, %v681
    %v698 = vsel %vm618, %v602, %v682
    %v699 = vsel %vm619, %v603, %v683
    %v700 = vsel %vm620, %v604, %v684
    %v701 = vsel %vm621, %v605, %v685
    %v702 = vsel %vm622, %v606, %v686
    %v703 = vsel %vm623, %v607, %v687
    %v704 = vsel %vm624, %v608, %v688
    %v705 = vsel %vm625, %v609, %v689
    %v706 = vsel %vm626, %v610, %v690
    %v707 = vsel %vm627, %v611, %v691
    %v708 = vsel %vm628, %v612, %v692
    %v709 = vsel %vm629, %v613, %v693
    %v710 = vsel %vm630, %v614, %v694
    %711 = vst [vmem:[%s3] sm:$0xff] %v695
    %712 = vst [vmem:[%s3 + $0x8] sm:$0xff] %v696
    %713 = vst [vmem:[%s3 + $0x10] sm:$0xff] %v697
    %714 = vst [vmem:[%s3 + $0x18] sm:$0xff] %v698
    %715 = vst [vmem:[%s3 + $0x20] sm:$0xff] %v699
    %716 = vst [vmem:[%s3 + $0x28] sm:$0xff] %v700
    %717 = vst [vmem:[%s3 + $0x30] sm:$0xff] %v701
    %718 = vst [vmem:[%s3 + $0x38] sm:$0xff] %v702
    %719 = vst [vmem:[%s3 + $0x40] sm:$0xff] %v703
    %720 = vst [vmem:[%s3 + $0x48] sm:$0xff] %v704
    %721 = vst [vmem:[%s3 + $0x50] sm:$0xff] %v705
    %722 = vst [vmem:[%s3 + $0x58] sm:$0xff] %v706
    %723 = vst [vmem:[%s3 + $0x60] sm:$0xff] %v707
    %724 = vst [vmem:[%s3 + $0x68] sm:$0xff] %v708
    %725 = vst [vmem:[%s3 + $0x70] sm:$0xff] %v709
    %726 = vst [vmem:[%s3 + $0x78] sm:$0xff] %v710
  $region21: #{global_self_attention.1} parent=0 // pred_fallthru
    _
  // Predicated region
  $region22: #{global_self_attention.1} parent=0 // pred_check
    _
  $region23: #{global_self_attention.1} parent=0 // pred_check_branch
    %728 = sbr.rel (0) target = $region25
  $region24: #{global_self_attention.1} parent=0 // pred_region
    _
  $region25: #{global_self_attention.1} parent=0 // pred_fallthru
    _
  // Predicated region
  $region26: #{global_self_attention.1} parent=0 // pred_check
    _
  $region27: #{global_self_attention.1} parent=0 // pred_check_branch
    %730 = sbr.rel (0) target = $region29
  $region28: #{global_self_attention.1} parent=0 // pred_region
    _
  $region29: #{global_self_attention.1} parent=0 // pred_fallthru
    _

</llo_original>
